<compile_context>
chip_gen: v7x
topology: tpu7x:2x2x1
jax: 0.10.0
libtpu: 0.0.40
codegen_flags: <defaults>
</compile_context>

<pallas_src>
import numpy as np
import jax
import jax.numpy as jnp
from jax import lax
from jax.experimental import pallas as pl
from jax.experimental.pallas import tpu as pltpu


def _round_up(x, m):
    return ((x + m - 1) // m) * m


def _pick_tile(dim, align, max_tile):
    """Largest multiple of `align` (<= max_tile) that minimizes padding of `dim`.

    Returns (tile, padded_dim). `dim` is first rounded up to `align`, so tile=align
    always gives zero padding; larger tiles are preferred among equal-padding choices.
    """
    d = _round_up(max(int(dim), 1), align)
    cap = max(align, min((max_tile // align) * align, d))
    best_t, best_padded = align, d
    t = cap
    while t >= align:
        padded = _round_up(d, t)
        if padded < best_padded or (padded == best_padded and t > best_t):
            best_t, best_padded = t, padded
        if padded == d:
            break  # largest zero-padding tile found (we iterate downward)
        t -= align
    return best_t, best_padded


def _pad2(a, rows, cols):
    pr, pc = rows - a.shape[0], cols - a.shape[1]
    if pr or pc:
        a = jnp.pad(a, ((0, pr), (0, pc)))
    return a


# ---------------------------------------------------------------------------
# Kernels
# ---------------------------------------------------------------------------
def _noisy_kernel(x_ref, wmu_ref, wsig_ref, nw_ref, beff_ref, o_ref, *scratch):
    # When the output dtype is f32 the output block itself (resident across k)
    # is the accumulator; otherwise an f32 VMEM scratch is supplied.
    acc_ref = scratch[0] if scratch else o_ref
    k = pl.program_id(2)

    @pl.when(k == 0)
    def _():
        acc_ref[...] = jnp.zeros_like(acc_ref)

    # Effective weight tile in its stored [out, in] layout; the MXU contracts the
    # last dim of both operands, so no transpose / relayout is requested here.
    w_eff = wmu_ref[...] + wsig_ref[...] * nw_ref[...]            # (tn, tk)
    acc_ref[...] += lax.dot_general(
        x_ref[...], w_eff,
        dimension_numbers=(((1,), (1,)), ((), ())),
        preferred_element_type=jnp.float32)

    @pl.when(k == pl.num_programs(2) - 1)
    def _():
        o_ref[...] = (acc_ref[...] + beff_ref[...]).astype(o_ref.dtype)


def _mu_kernel(x_ref, w_ref, b_ref, o_ref, *scratch):
    acc_ref = scratch[0] if scratch else o_ref
    k = pl.program_id(2)

    @pl.when(k == 0)
    def _():
        acc_ref[...] = jnp.zeros_like(acc_ref)

    acc_ref[...] += lax.dot_general(
        x_ref[...], w_ref[...],
        dimension_numbers=(((1,), (1,)), ((), ())),
        preferred_element_type=jnp.float32)

    @pl.when(k == pl.num_programs(2) - 1)
    def _():
        o_ref[...] = (acc_ref[...] + b_ref[...]).astype(o_ref.dtype)


# ---------------------------------------------------------------------------
# Launch helpers
# ---------------------------------------------------------------------------
def _tiles_and_grid(B, N, K, tm_max, tn_max, tk_max):
    tm, Mp = _pick_tile(B, 8, tm_max)
    gi = Mp // tm
    n128 = _round_up(N, 128)
    tn_cap = tn_max
    if gi == 1 and n128 >= 256:
        # Keep >=2 output-column tiles so both v7x TensorCores get parallel work.
        tn_cap = min(tn_max, max(128, (n128 // 2 // 128) * 128))
    tn, Np = _pick_tile(N, 128, tn_cap)
    tk, Kp = _pick_tile(K, 128, tk_max)
    grid = (Mp // tm, Np // tn, Kp // tk)
    return tm, tn, tk, Mp, Np, Kp, grid


def _launch(kernel, xp, weights_2d, bias_1xN, out_dtype,
            tm, tn, tk, Mp, Np, Kp, grid):
    x_spec = pl.BlockSpec((tm, tk), lambda i, j, k: (i, k))
    w_spec = pl.BlockSpec((tn, tk), lambda i, j, k: (j, k))
    b_spec = pl.BlockSpec((1, tn), lambda i, j, k: (0, j))
    o_spec = pl.BlockSpec((tm, tn), lambda i, j, k: (i, j))
    in_specs = [x_spec] + [w_spec] * len(weights_2d) + [b_spec]

    direct_acc = np.dtype(out_dtype) == np.dtype(np.float32)
    scratch = [] if direct_acc else [pltpu.VMEM((tm, tn), jnp.float32)]

    # Tile caps keep worst-case double-buffered VMEM use ~14 MiB: safe on v7x
    # (64 MiB physical) and comfortably inside v5e/v6e (128 MiB).
    compiler_params = pltpu.CompilerParams(
        dimension_semantics=("parallel", "parallel", "arbitrary"),
        vmem_limit_bytes=48 * 1024 * 1024)

    return pl.pallas_call(
        kernel,
        out_shape=jax.ShapeDtypeStruct((Mp, Np), out_dtype),
        grid_spec=pltpu.PrefetchScalarGridSpec(
            num_scalar_prefetch=0,
            grid=grid,
            in_specs=in_specs,
            out_specs=o_spec,
            scratch_shapes=scratch),
        compiler_params=compiler_params,
    )(xp, *weights_2d, bias_1xN)


# ---------------------------------------------------------------------------
# Public wrappers
# ---------------------------------------------------------------------------
def linear_forward(x, w, b, *, tm_max=1024, tn_max=512, tk_max=512):
    """y = x @ w.T + b  (w in PyTorch [out, in] layout).  Used for eval and for the
    cached-effective-weights fast path."""
    B, K = x.shape
    N = w.shape[0]
    out_dtype = jnp.result_type(x.dtype, w.dtype)
    tm, tn, tk, Mp, Np, Kp, grid = _tiles_and_grid(B, N, K, tm_max, tn_max, tk_max)

    xp = _pad2(x, Mp, Kp)
    wp = _pad2(w, Np, Kp)
    bp = _pad2(b.reshape(1, -1), 1, Np)

    out = _launch(_mu_kernel, xp, [wp], bp, out_dtype, tm, tn, tk, Mp, Np, Kp, grid)
    return out[:B, :N]


def effective_weights(w_mu, w_sigma, noise_w, b_mu, b_sigma, noise_b):
    """Precompute (w_eff, b_eff) once when the noise is held fixed across many forwards
    (typical RL usage); then call linear_forward(x, w_eff, b_eff) per step — one [N,K]
    HBM stream instead of three."""
    return w_mu + w_sigma * noise_w, b_mu + b_sigma * noise_b


def noisy_linear(x, w_mu, w_sigma, noise_w, b_mu, b_sigma, noise_b,
                 *, training=True, tm_max=1024, tn_max=512, tk_max=512):
    """Pallas implementation of NoisyLinear.forward.

    x:                      [B, in]
    w_mu/w_sigma/noise_w:   [out, in]   (PyTorch Linear layout)
    b_mu/b_sigma/noise_b:   [out]
    returns:                [B, out]
    """
    if not training:
        # Eval path: mu-only linear; never streams sigma / noise from HBM.
        return linear_forward(x, w_mu, b_mu,
                              tm_max=tm_max, tn_max=tn_max, tk_max=tk_max)

    B, K = x.shape
    N = w_mu.shape[0]
    out_dtype = jnp.result_type(x.dtype, w_mu.dtype)

    # Effective bias is N elements — precompute in the wrapper (one operand instead of 3).
    b_eff = (b_mu + b_sigma * noise_b).reshape(1, -1)

    tm, tn, tk, Mp, Np, Kp, grid = _tiles_and_grid(B, N, K, tm_max, tn_max, tk_max)

    xp = _pad2(x, Mp, Kp)
    wmup = _pad2(w_mu, Np, Kp)
    wsigp = _pad2(w_sigma, Np, Kp)
    nwp = _pad2(noise_w, Np, Kp)
    bp = _pad2(b_eff, 1, Np)

    out = _launch(_noisy_kernel, xp, [wmup, wsigp, nwp], bp, out_dtype,
                  tm, tn, tk, Mp, Np, Kp, grid)
    return out[:B, :N]


# ---------------------------------------------------------------------------
# Reference + test
# ---------------------------------------------------------------------------
def _reference(x, w_mu, w_sigma, noise_w, b_mu, b_sigma, noise_b, training=True):
    if training:
        w = w_mu + w_sigma * noise_w
        b = b_mu + b_sigma * noise_b
    else:
        w, b = w_mu, b_mu
    return x @ w.T + b


def _make_inputs(key, batch, in_size, out_size, sigma=0.5):
    k_x, k_wmu, k_bmu, k_nw, k_nb = jax.random.split(key, 5)
    stdv = 1.0 / np.sqrt(in_size)
    w_mu = jax.random.uniform(k_wmu, (out_size, in_size), jnp.float32,
                              minval=-stdv, maxval=stdv)
    b_mu = jax.random.uniform(k_bmu, (out_size,), jnp.float32,
                              minval=-stdv, maxval=stdv)
    w_sigma = jnp.full((out_size, in_size), sigma * stdv, jnp.float32)
    b_sigma = jnp.full((out_size,), sigma * stdv, jnp.float32)
    noise_w = jax.random.normal(k_nw, (out_size, in_size), jnp.float32)
    noise_b = jax.random.normal(k_nb, (out_size,), jnp.float32)
    x = jax.random.normal(k_x, (batch, in_size), jnp.float32)
    return x, w_mu, w_sigma, noise_w, b_mu, b_sigma, noise_b


if __name__ == "__main__":
    key = jax.random.PRNGKey(0)
    k1, k2 = jax.random.split(key)

    # --- small, module-implied shapes (single tile after padding) ---
    args = _make_inputs(k1, batch=8, in_size=32, out_size=16)
    y = jax.block_until_ready(noisy_linear(*args, training=True))
    np.testing.assert_allclose(np.asarray(y),
                               np.asarray(_reference(*args, training=True)),
                               rtol=1e-5, atol=1e-5)
    y_eval = jax.block_until_ready(noisy_linear(*args, training=False))
    np.testing.assert_allclose(np.asarray(y_eval),
                               np.asarray(_reference(*args, training=False)),
                               rtol=1e-5, atol=1e-5)

    # --- larger, unaligned shapes exercising K/N tiling, min-padding picker,
    #     and the grid_j >= 2 split for v7x dual TensorCores ---
    args2 = _make_inputs(k2, batch=16, in_size=640, out_size=272)
    y2 = jax.block_until_ready(noisy_linear(*args2, training=True))
    np.testing.assert_allclose(np.asarray(y2),
                               np.asarray(_reference(*args2, training=True)),
                               rtol=1e-4, atol=1e-4)
    y2_eval = jax.block_until_ready(noisy_linear(*args2, training=False))
    np.testing.assert_allclose(np.asarray(y2_eval),
                               np.asarray(_reference(*args2, training=False)),
                               rtol=1e-4, atol=1e-4)

    # --- cached effective-weights path (noise held fixed across forwards) ---
    w_eff, b_eff = effective_weights(*args2[1:])
    y3 = jax.block_until_ready(linear_forward(args2[0], w_eff, b_eff))
    np.testing.assert_allclose(np.asarray(y3),
                               np.asarray(_reference(*args2, training=True)),
                               rtol=1e-4, atol=1e-4)

    # --- bf16 parameter/activation storage: halves dominant HBM bytes, f32 accumulate ---
    args_bf16 = tuple(a.astype(jnp.bfloat16) for a in args2)
    y4 = jax.block_until_ready(noisy_linear(*args_bf16, training=True))
    ref_bf16 = _reference(*[a.astype(jnp.float32) for a in args_bf16], training=True)
    np.testing.assert_allclose(np.asarray(y4, dtype=np.float32),
                               np.asarray(ref_bf16),
                               rtol=5e-2, atol=5e-2)

    print("KERNEL_OK")
</pallas_src>

<mosaic_0001>
module attributes {stable_mosaic.version = 11 : i64} {
  func.func @_noisy_kernel(%arg0: i32, %arg1: i32, %arg2: i32, %arg3: memref<8x128xf32, #tpu.memory_space<vmem>>, %arg4: memref<128x128xf32, #tpu.memory_space<vmem>>, %arg5: memref<128x128xf32, #tpu.memory_space<vmem>>, %arg6: memref<128x128xf32, #tpu.memory_space<vmem>>, %arg7: memref<1x128xf32, #tpu.memory_space<vmem>>, %arg8: memref<8x128xf32, #tpu.memory_space<vmem>>) attributes {dimension_semantics = [#tpu.dimension_semantics<parallel>, #tpu.dimension_semantics<parallel>, #tpu.dimension_semantics<arbitrary>], iteration_bounds = array<i64: 1, 1, 1>, scalar_prefetch = 0 : i64, scratch_operands = 0 : i64, tpu.core_type = #tpu.core_type<tc>, window_params = [{transform_indices = @transform_0, window_bounds = array<i64: 8, 128>}, {transform_indices = @transform_1, window_bounds = array<i64: 128, 128>}, {transform_indices = @transform_2, window_bounds = array<i64: 128, 128>}, {transform_indices = @transform_3, window_bounds = array<i64: 128, 128>}, {transform_indices = @transform_4, window_bounds = array<i64: 1, 128>}, {transform_indices = @transform_5, window_bounds = array<i64: 8, 128>}]} {
    %c0_i32 = arith.constant 0 : i32
    %0 = arith.cmpi eq, %arg2, %c0_i32 : i32
    %1 = arith.extui %0 : i1 to i32
    %c0_i32_0 = arith.constant 0 : i32
    %2 = arith.cmpi ne, %1, %c0_i32_0 : i32
    scf.if %2 {
      %cst_14 = arith.constant 0.000000e+00 : f32
      %16 = vector.broadcast %cst_14 : f32 to vector<8x128xf32>
      %c0_15 = arith.constant 0 : index
      %c0_16 = arith.constant 0 : index
      %17 = vector.load %arg8[%c0_15, %c0_16] : memref<8x128xf32, #tpu.memory_space<vmem>>, vector<8x128xf32>
      tpu.vector_store %arg8[%c0_15, %c0_16], %16 {strides = array<i32>} : memref<8x128xf32, #tpu.memory_space<vmem>>, vector<8x128xf32>,
    } else {
    }
    %c0 = arith.constant 0 : index
    %c0_1 = arith.constant 0 : index
    %3 = vector.load %arg4[%c0, %c0_1] : memref<128x128xf32, #tpu.memory_space<vmem>>, vector<128x128xf32>
    %c0_2 = arith.constant 0 : index
    %c0_3 = arith.constant 0 : index
    %4 = vector.load %arg5[%c0_2, %c0_3] : memref<128x128xf32, #tpu.memory_space<vmem>>, vector<128x128xf32>
    %c0_4 = arith.constant 0 : index
    %c0_5 = arith.constant 0 : index
    %5 = vector.load %arg6[%c0_4, %c0_5] : memref<128x128xf32, #tpu.memory_space<vmem>>, vector<128x128xf32>
    %6 = arith.mulf %4, %5 : vector<128x128xf32>
    %7 = arith.addf %3, %6 : vector<128x128xf32>
    %c0_6 = arith.constant 0 : index
    %c0_7 = arith.constant 0 : index
    %8 = vector.load %arg8[%c0_6, %c0_7] : memref<8x128xf32, #tpu.memory_space<vmem>>, vector<8x128xf32>
    %c0_8 = arith.constant 0 : index
    %c0_9 = arith.constant 0 : index
    %9 = vector.load %arg3[%c0_8, %c0_9] : memref<8x128xf32, #tpu.memory_space<vmem>>, vector<8x128xf32>
    %cst = arith.constant dense<0.000000e+00> : vector<8x128xf32>
    %10 = tpu.matmul %9, %7, %cst {dimension_numbers = #tpu.dot_dimension_numbers<[1], [1], [0], [0], [0, 0, 1, 0], [], []>} : vector<8x128xf32>, vector<128x128xf32>, vector<8x128xf32> -> vector<8x128xf32>
    %11 = arith.addf %8, %10 : vector<8x128xf32>
    %c0_10 = arith.constant 0 : index
    %c0_11 = arith.constant 0 : index
    %12 = vector.load %arg8[%c0_10, %c0_11] : memref<8x128xf32, #tpu.memory_space<vmem>>, vector<8x128xf32>
    tpu.vector_store %arg8[%c0_10, %c0_11], %11 {strides = array<i32>} : memref<8x128xf32, #tpu.memory_space<vmem>>, vector<8x128xf32>,
    %c0_i32_12 = arith.constant 0 : i32
    %13 = arith.cmpi eq, %arg2, %c0_i32_12 : i32
    %14 = arith.extui %13 : i1 to i32
    %c0_i32_13 = arith.constant 0 : i32
    %15 = arith.cmpi ne, %14, %c0_i32_13 : i32
    scf.if %15 {
      %c0_14 = arith.constant 0 : index
      %c0_15 = arith.constant 0 : index
      %16 = vector.load %arg8[%c0_14, %c0_15] : memref<8x128xf32, #tpu.memory_space<vmem>>, vector<8x128xf32>
      %c0_16 = arith.constant 0 : index
      %c0_17 = arith.constant 0 : index
      %17 = vector.load %arg7[%c0_16, %c0_17] : memref<1x128xf32, #tpu.memory_space<vmem>>, vector<1x128xf32>
      %18 = vector.broadcast %17 : vector<1x128xf32> to vector<8x128xf32>
      %19 = arith.addf %16, %18 : vector<8x128xf32>
      %c0_18 = arith.constant 0 : index
      %c0_19 = arith.constant 0 : index
      %20 = vector.load %arg8[%c0_18, %c0_19] : memref<8x128xf32, #tpu.memory_space<vmem>>, vector<8x128xf32>
      tpu.vector_store %arg8[%c0_18, %c0_19], %19 {strides = array<i32>} : memref<8x128xf32, #tpu.memory_space<vmem>>, vector<8x128xf32>,
    } else {
    }
    return
  }
  func.func @transform_0(%arg0: i32, %arg1: i32, %arg2: i32) -> (i32, i32) {
    %c0_i32 = arith.constant 0 : i32
    return %arg0, %arg2 : i32, i32
  }
  func.func @transform_1(%arg0: i32, %arg1: i32, %arg2: i32) -> (i32, i32) {
    %c0_i32 = arith.constant 0 : i32
    return %arg1, %arg2 : i32, i32
  }
  func.func @transform_2(%arg0: i32, %arg1: i32, %arg2: i32) -> (i32, i32) {
    %c0_i32 = arith.constant 0 : i32
    return %arg1, %arg2 : i32, i32
  }
  func.func @transform_3(%arg0: i32, %arg1: i32, %arg2: i32) -> (i32, i32) {
    %c0_i32 = arith.constant 0 : i32
    return %arg1, %arg2 : i32, i32
  }
  func.func @transform_4(%arg0: i32, %arg1: i32, %arg2: i32) -> (i32, i32) {
    %c0_i32 = arith.constant 0 : i32
    %c0_i32_0 = arith.constant 0 : i32
    return %c0_i32, %arg1 : i32, i32
  }
  func.func @transform_5(%arg0: i32, %arg1: i32, %arg2: i32) -> (i32, i32) {
    %c0_i32 = arith.constant 0 : i32
    return %arg0, %arg1 : i32, i32
  }
}

</mosaic_0001>

<llo_original>
// kernel: tpu_custom_call.1
$region0: #{tpu_custom_call.1}
  #allocation0 [shape = 'u32[]', space=smem, size = 0x4, offset = 0x4, fixed_abs, tag = 'smem constant byte address 0x4 - core index']
  #allocation1 [shape = 'u32[144,128]{1,0:T(1,128)}', space=vmem, size = 0x12000, scoped, tag = 'internal scratch']
  %s0 = inlined_call_operand.hbm [shape: f32[8,128], index: 0, kind: input, shape index: {}]
  %s1 = inlined_call_operand.hbm [shape: f32[128,128], index: 1, kind: input, shape index: {}]
  %s2 = inlined_call_operand.hbm [shape: f32[128,128], index: 2, kind: input, shape index: {}]
  %s3 = inlined_call_operand.hbm [shape: f32[128,128], index: 3, kind: input, shape index: {}]
  %s4 = inlined_call_operand.vmem [shape: f32[1,128], index: 4, kind: input, shape index: {}]
  %s5 = inlined_call_operand.hbm [shape: f32[8,128], index: 5, kind: output, shape index: {}]
  %s6 = sld [smem:[#allocation0]]
  $region54: #{tpu_custom_call.1} parent=0
    _
  %s8 = ssub.s32 1, %s6
  %s9 = scalar_select 0, %s8, %s6
  $region1: #{tpu_custom_call.1} parent=0
    #allocation2 [shape = 'u8[4096]{0}', space=vmem, size = 0x1000, scoped, tag = 'input window, operand 0, single buffered']
    #allocation3 [shape = 's32[1]{0}', space=sflag, size = 0x4, scoped, tag = 'scoped memory for tpu_custom_call.1']
    #allocation4 [shape = 's32[1]{0}', space=sflag, size = 0x4, scoped, tag = 'scoped memory for tpu_custom_call.1']
    #allocation5 [shape = 'u8[65536]{0}', space=vmem, size = 0x10000, scoped, tag = 'input window, operand 1, single buffered']
    #allocation6 [shape = 's32[1]{0}', space=sflag, size = 0x4, scoped, tag = 'scoped memory for tpu_custom_call.1']
    #allocation7 [shape = 'u8[65536]{0}', space=vmem, size = 0x10000, scoped, tag = 'input window, operand 2, single buffered']
    #allocation8 [shape = 'u8[65536]{0}', space=vmem, size = 0x10000, scoped, tag = 'input window, operand 3, single buffered']
    #allocation9 [shape = 's32[1]{0}', space=sflag, size = 0x4, scoped, tag = 'scoped memory for tpu_custom_call.1']
    #allocation10 [shape = 'u8[4096]{0}', space=vmem, size = 0x1000, scoped, tag = 'output window, operand 0, single buffered']
    %10 = vsyncpa [#allocation3], 0
    %11 = vsyncpa [#allocation6], 0
    %12 = vsyncpa [#allocation9], 0
    %13 = vsyncpa [#allocation4], 0
    // Predicated region
    $region2: #{tpu_custom_call.1} parent=1 // pred_check
      _
    $region3: #{tpu_custom_call.1} parent=1 // pred_check_branch
      %15 = sbr.rel (0) target = $region5
    $region4: #{tpu_custom_call.1} parent=1 // pred_region
      %s17 = ssub.s32 128, 128
      %18 = vsyncadd [#allocation3], %s17
      %s20 = sshll.u32 [#allocation2], 4
      %s21 = int_to_ptr.vmem [resolvable:$true] %s20
      %23 = dma.hbm_to_vmem [thread:$0]  %s0, 128, %s21, [#allocation3]
    $region5: #{tpu_custom_call.1} parent=1 // pred_fallthru
      _
    // Predicated region
    $region6: #{tpu_custom_call.1} parent=1 // pred_check
      _
    $region7: #{tpu_custom_call.1} parent=1 // pred_check_branch
      %25 = sbr.rel (0) target = $region9
    $region8: #{tpu_custom_call.1} parent=1 // pred_region
      %s27 = ssub.s32 2048, 2048
      %28 = vsyncadd [#allocation6], %s27
      %s29 = sshll.u32 [#allocation5], 4
      %s30 = int_to_ptr.vmem [resolvable:$true] %s29
      %35 = dma.hbm_to_vmem [thread:$0]  %s1, 2048, %s30, [#allocation6], 128, 128, 8
    $region9: #{tpu_custom_call.1} parent=1 // pred_fallthru
      _
    // Predicated region
    $region10: #{tpu_custom_call.1} parent=1 // pred_check
      _
    $region11: #{tpu_custom_call.1} parent=1 // pred_check_branch
      %37 = sbr.rel (0) target = $region13
    $region12: #{tpu_custom_call.1} parent=1 // pred_region
      %s39 = ssub.s32 2048, 2048
      %40 = vsyncadd [#allocation6], %s39
      %s41 = sshll.u32 [#allocation7], 4
      %s42 = int_to_ptr.vmem [resolvable:$true] %s41
      %47 = dma.hbm_to_vmem [thread:$0]  %s2, 2048, %s42, [#allocation6], 128, 128, 8
    $region13: #{tpu_custom_call.1} parent=1 // pred_fallthru
      _
    // Predicated region
    $region14: #{tpu_custom_call.1} parent=1 // pred_check
      _
    $region15: #{tpu_custom_call.1} parent=1 // pred_check_branch
      %49 = sbr.rel (0) target = $region17
    $region16: #{tpu_custom_call.1} parent=1 // pred_region
      %s51 = ssub.s32 2048, 2048
      %52 = vsyncadd [#allocation9], %s51
      %s53 = sshll.u32 [#allocation8], 4
      %s54 = int_to_ptr.vmem [resolvable:$true] %s53
      %59 = dma.hbm_to_vmem [thread:$0]  %s3, 2048, %s54, [#allocation9], 128, 128, 8
    $region17: #{tpu_custom_call.1} parent=1 // pred_fallthru
      _
    // Predicated region
    $region18: #{tpu_custom_call.1} parent=1 // pred_check
      _
    $region19: #{tpu_custom_call.1} parent=1 // pred_check_branch
      %61 = sbr.rel (0) target = $region21
    $region20: #{tpu_custom_call.1} parent=1 // pred_region
      _
    $region21: #{tpu_custom_call.1} parent=1 // pred_fallthru
      _
    // Predicated region
    $region22: #{tpu_custom_call.1} parent=1 // pred_check
      _
    $region23: #{tpu_custom_call.1} parent=1 // pred_check_branch
      %63 = sbr.rel (0) target = $region25
    $region24: #{tpu_custom_call.1} parent=1 // pred_region
      %64 = dma.done [#allocation3], 128
    $region25: #{tpu_custom_call.1} parent=1 // pred_fallthru
      _
    // Predicated region
    $region26: #{tpu_custom_call.1} parent=1 // pred_check
      _
    $region27: #{tpu_custom_call.1} parent=1 // pred_check_branch
      %66 = sbr.rel (0) target = $region29
    $region28: #{tpu_custom_call.1} parent=1 // pred_region
      %67 = dma.done [#allocation6], 2048
    $region29: #{tpu_custom_call.1} parent=1 // pred_fallthru
      _
    // Predicated region
    $region30: #{tpu_custom_call.1} parent=1 // pred_check
      _
    $region31: #{tpu_custom_call.1} parent=1 // pred_check_branch
      %69 = sbr.rel (0) target = $region33
    $region32: #{tpu_custom_call.1} parent=1 // pred_region
      %70 = dma.done [#allocation6], 2048
    $region33: #{tpu_custom_call.1} parent=1 // pred_fallthru
      _
    // Predicated region
    $region34: #{tpu_custom_call.1} parent=1 // pred_check
      _
    $region35: #{tpu_custom_call.1} parent=1 // pred_check_branch
      %72 = sbr.rel (0) target = $region37
    $region36: #{tpu_custom_call.1} parent=1 // pred_region
      %73 = dma.done [#allocation9], 2048
    $region37: #{tpu_custom_call.1} parent=1 // pred_fallthru
      _
    %p74 = scmp.eq.s32.totalorder 0, 0
    // Predicated region
    $region38: #{tpu_custom_call.1} parent=1 // pred_check
      %p75 = pneg %p74
    $region39: #{tpu_custom_call.1} parent=1 // pred_check_branch
      %77 = sbr.rel (%p75) target = $region41
    $region40: #{tpu_custom_call.1} parent=1 // pred_region
      %78 = vst [vmem:[#allocation10] sm:$0xff] 0.0
    $region41: #{tpu_custom_call.1} parent=1 // pred_fallthru
      _
    %v79 = vld [vmem:[#allocation5] sm:$0xff]
    %v80 = vld [vmem:[#allocation5 + $0x8] sm:$0xff]
    %v81 = vld [vmem:[#allocation5 + $0x10] sm:$0xff]
    %v82 = vld [vmem:[#allocation5 + $0x18] sm:$0xff]
    %v83 = vld [vmem:[#allocation5 + $0x20] sm:$0xff]
    %v84 = vld [vmem:[#allocation5 + $0x28] sm:$0xff]
    %v85 = vld [vmem:[#allocation5 + $0x30] sm:$0xff]
    %v86 = vld [vmem:[#allocation5 + $0x38] sm:$0xff]
    %v87 = vld [vmem:[#allocation5 + $0x40] sm:$0xff]
    %v88 = vld [vmem:[#allocation5 + $0x48] sm:$0xff]
    %v89 = vld [vmem:[#allocation5 + $0x50] sm:$0xff]
    %v90 = vld [vmem:[#allocation5 + $0x58] sm:$0xff]
    %v91 = vld [vmem:[#allocation5 + $0x60] sm:$0xff]
    %v92 = vld [vmem:[#allocation5 + $0x68] sm:$0xff]
    %v93 = vld [vmem:[#allocation5 + $0x70] sm:$0xff]
    %v94 = vld [vmem:[#allocation5 + $0x78] sm:$0xff]
    %v95 = vld [vmem:[#allocation7] sm:$0xff]
    %v96 = vld [vmem:[#allocation7 + $0x8] sm:$0xff]
    %v97 = vld [vmem:[#allocation7 + $0x10] sm:$0xff]
    %v98 = vld [vmem:[#allocation7 + $0x18] sm:$0xff]
    %v99 = vld [vmem:[#allocation7 + $0x20] sm:$0xff]
    %v100 = vld [vmem:[#allocation7 + $0x28] sm:$0xff]
    %v101 = vld [vmem:[#allocation7 + $0x30] sm:$0xff]
    %v102 = vld [vmem:[#allocation7 + $0x38] sm:$0xff]
    %v103 = vld [vmem:[#allocation7 + $0x40] sm:$0xff]
    %v104 = vld [vmem:[#allocation7 + $0x48] sm:$0xff]
    %v105 = vld [vmem:[#allocation7 + $0x50] sm:$0xff]
    %v106 = vld [vmem:[#allocation7 + $0x58] sm:$0xff]
    %v107 = vld [vmem:[#allocation7 + $0x60] sm:$0xff]
    %v108 = vld [vmem:[#allocation7 + $0x68] sm:$0xff]
    %v109 = vld [vmem:[#allocation7 + $0x70] sm:$0xff]
    %v110 = vld [vmem:[#allocation7 + $0x78] sm:$0xff]
    %v111 = vld [vmem:[#allocation8] sm:$0xff]
    %v112 = vld [vmem:[#allocation8 + $0x8] sm:$0xff]
    %v113 = vld [vmem:[#allocation8 + $0x10] sm:$0xff]
    %v114 = vld [vmem:[#allocation8 + $0x18] sm:$0xff]
    %v115 = vld [vmem:[#allocation8 + $0x20] sm:$0xff]
    %v116 = vld [vmem:[#allocation8 + $0x28] sm:$0xff]
    %v117 = vld [vmem:[#allocation8 + $0x30] sm:$0xff]
    %v118 = vld [vmem:[#allocation8 + $0x38] sm:$0xff]
    %v119 = vld [vmem:[#allocation8 + $0x40] sm:$0xff]
    %v120 = vld [vmem:[#allocation8 + $0x48] sm:$0xff]
    %v121 = vld [vmem:[#allocation8 + $0x50] sm:$0xff]
    %v122 = vld [vmem:[#allocation8 + $0x58] sm:$0xff]
    %v123 = vld [vmem:[#allocation8 + $0x60] sm:$0xff]
    %v124 = vld [vmem:[#allocation8 + $0x68] sm:$0xff]
    %v125 = vld [vmem:[#allocation8 + $0x70] sm:$0xff]
    %v126 = vld [vmem:[#allocation8 + $0x78] sm:$0xff]
    %v127 = vmul.f32 %v95, %v111
    %v128 = vmul.f32 %v96, %v112
    %v129 = vmul.f32 %v97, %v113
    %v130 = vmul.f32 %v98, %v114
    %v131 = vmul.f32 %v99, %v115
    %v132 = vmul.f32 %v100, %v116
    %v133 = vmul.f32 %v101, %v117
    %v134 = vmul.f32 %v102, %v118
    %v135 = vmul.f32 %v103, %v119
    %v136 = vmul.f32 %v104, %v120
    %v137 = vmul.f32 %v105, %v121
    %v138 = vmul.f32 %v106, %v122
    %v139 = vmul.f32 %v107, %v123
    %v140 = vmul.f32 %v108, %v124
    %v141 = vmul.f32 %v109, %v125
    %v142 = vmul.f32 %v110, %v126
    %v143 = vadd.f32 %v79, %v127
    %v144 = vadd.f32 %v80, %v128
    %v145 = vadd.f32 %v81, %v129
    %v146 = vadd.f32 %v82, %v130
    %v147 = vadd.f32 %v83, %v131
    %v148 = vadd.f32 %v84, %v132
    %v149 = vadd.f32 %v85, %v133
    %v150 = vadd.f32 %v86, %v134
    %v151 = vadd.f32 %v87, %v135
    %v152 = vadd.f32 %v88, %v136
    %v153 = vadd.f32 %v89, %v137
    %v154 = vadd.f32 %v90, %v138
    %v155 = vadd.f32 %v91, %v139
    %v156 = vadd.f32 %v92, %v140
    %v157 = vadd.f32 %v93, %v141
    %v158 = vadd.f32 %v94, %v142
    %v159 = vld [vmem:[#allocation10] sm:$0xff]
    %v160 = vld [vmem:[#allocation2] sm:$0xff]
    %161 = vmatprep.subr.mxu0 0.0
    %162 = vmatpush1.xpose.msra.mxu0 %v143
    %163 = vmatprep.subr.mxu0 0.0
    %164 = vmatpush1.xpose.msra.mxu0 %v144
    %165 = vmatprep.subr.mxu0 0.0
    %166 = vmatpush1.xpose.msra.mxu0 %v145
    %167 = vmatprep.subr.mxu0 0.0
    %168 = vmatpush1.xpose.msra.mxu0 %v146
    %169 = vmatprep.subr.mxu0 0.0
    %170 = vmatpush1.xpose.msra.mxu0 %v147
    %171 = vmatprep.subr.mxu0 0.0
    %172 = vmatpush1.xpose.msra.mxu0 %v148
    %173 = vmatprep.subr.mxu0 0.0
    %174 = vmatpush1.xpose.msra.mxu0 %v149
    %175 = vmatprep.subr.mxu0 0.0
    %176 = vmatpush1.xpose.msra.mxu0 %v150
    %177 = vmatprep.subr.mxu0 0.0
    %178 = vmatpush1.xpose.msra.mxu0 %v151
    %179 = vmatprep.subr.mxu0 0.0
    %180 = vmatpush1.xpose.msra.mxu0 %v152
    %181 = vmatprep.subr.mxu0 0.0
    %182 = vmatpush1.xpose.msra.mxu0 %v153
    %183 = vmatprep.subr.mxu0 0.0
    %184 = vmatpush1.xpose.msra.mxu0 %v154
    %185 = vmatprep.subr.mxu0 0.0
    %186 = vmatpush1.xpose.msra.mxu0 %v155
    %187 = vmatprep.subr.mxu0 0.0
    %188 = vmatpush1.xpose.msra.mxu0 %v156
    %189 = vmatprep.subr.mxu0 0.0
    %190 = vmatpush1.xpose.msra.mxu0 %v157
    %191 = vmatprep.subr.mxu0 0.0
    %192 = vmatpush1.xpose.msra.mxu0 %v158
    %193 = vmatprep.subr.mxu0 0.0
    %194 = vmatpush1.xpose.msra.mxu0 0.0
    %195 = vmatprep.subr.mxu0 0.0
    %196 = vmatpush1.xpose.msra.mxu0 0.0
    %197 = vmatprep.subr.mxu0 0.0
    %198 = vmatpush1.xpose.msra.mxu0 0.0
    %199 = vmatprep.subr.mxu0 0.0
    %200 = vmatpush1.xpose.msra.mxu0 0.0
    %201 = vmatprep.subr.mxu0 0.0
    %202 = vmatpush1.xpose.msra.mxu0 0.0
    %203 = vmatprep.subr.mxu0 0.0
    %204 = vmatpush1.xpose.msra.mxu0 0.0
    %205 = vmatprep.subr.mxu0 0.0
    %206 = vmatpush1.xpose.msra.mxu0 0.0
    %207 = vmatprep.subr.mxu0 0.0
    %208 = vmatpush1.xpose.msra.mxu0 0.0
    %209 = vmatprep.subr.mxu0 0.0
    %210 = vmatpush1.xpose.msra.mxu0 0.0
    %211 = vmatprep.subr.mxu0 0.0
    %212 = vmatpush1.xpose.msra.mxu0 0.0
    %213 = vmatprep.subr.mxu0 0.0
    %214 = vmatpush1.xpose.msra.mxu0 0.0
    %215 = vmatprep.subr.mxu0 0.0
    %216 = vmatpush1.xpose.msra.mxu0 0.0
    %217 = vmatprep.subr.mxu0 0.0
    %218 = vmatpush1.xpose.msra.mxu0 0.0
    %219 = vmatprep.subr.mxu0 0.0
    %220 = vmatpush1.xpose.msra.mxu0 0.0
    %221 = vmatprep.subr.mxu0 0.0
    %222 = vmatpush1.xpose.msra.mxu0 0.0
    %223 = vmatprep.subr.mxu0 0.0
    %224 = vmatpush1.xpose.msra.mxu0 0.0
    %225 = vmatprep.mubr.f32.mxu0 0.0
    %226 = vmatmul.mubr.f32.gmra.mrb[0].mxu0 %v160
    %v227 = vpop.f32.mrb[0].mxu0
    %v228 = vadd.f32 0.0, %v227
    %v229 = vpop.f32.mrb[0].mxu0
    %230 = vdwg.mxu0
    %v231 = vadd.f32 %v159, %v228
    %232 = vst [vmem:[#allocation10] sm:$0xff] %v231
    // Predicated region
    $region42: #{tpu_custom_call.1} parent=1 // pred_check
      %p233 = pneg %p74
    $region43: #{tpu_custom_call.1} parent=1 // pred_check_branch
      %235 = sbr.rel (%p233) target = $region45
    $region44: #{tpu_custom_call.1} parent=1 // pred_region
      %v236 = vld [vmem:[#allocation10] sm:$0xff]
      %v237 = vld [vmem:[%s4] sm:$0x1]
      %v239 = vlaneseq
      %v240 = vshrl.u32 %v239, 7
      %v241 = vsub.s32 0, %v240
      %v242 = vrot.slane %v237, %v241
      %v244 = vadd.f32 %v236, %v242
      %245 = vst [vmem:[#allocation10] sm:$0xff] %v244
    $region45: #{tpu_custom_call.1} parent=1 // pred_fallthru
      _
    // Predicated region
    $region46: #{tpu_custom_call.1} parent=1 // pred_check
      _
    $region47: #{tpu_custom_call.1} parent=1 // pred_check_branch
      %247 = sbr.rel (0) target = $region49
    $region48: #{tpu_custom_call.1} parent=1 // pred_region
      %s249 = ssub.s32 128, 128
      %250 = vsyncadd [#allocation4], %s249
      %s252 = sshll.u32 [#allocation10], 4
      %s253 = int_to_ptr.vmem [resolvable:$true] %s252
      %255 = dma.vmem_to_hbm [thread:$0]  %s253, 128, %s5, [#allocation4]
    $region49: #{tpu_custom_call.1} parent=1 // pred_fallthru
      _
    // Predicated region
    $region50: #{tpu_custom_call.1} parent=1 // pred_check
      _
    $region51: #{tpu_custom_call.1} parent=1 // pred_check_branch
      %257 = sbr.rel (0) target = $region53
    $region52: #{tpu_custom_call.1} parent=1 // pred_region
      %258 = dma.done [#allocation4], 128
    $region53: #{tpu_custom_call.1} parent=1 // pred_fallthru
      _
    %259 = vsyncpa [#allocation3], 1
    %260 = vsyncpa [#allocation6], 1
    %261 = vsyncpa [#allocation9], 1
    %262 = vsyncpa [#allocation4], 1

</llo_original>
